<compile_context>
chip_gen: v7x
topology: tpu7x:2x2x1
jax: 0.10.0
libtpu: 0.0.40
codegen_flags: <defaults>
</compile_context>

<pallas_src>
import math

import jax
import jax.numpy as jnp
from jax.experimental import pallas as pl
from jax.experimental.pallas import tpu as pltpu


def _copy_kernel(x_ref, o_ref):
    # Identity copy of one (block_rows, lanes) tile.
    o_ref[...] = x_ref[...]


def _sublane_pack(dtype) -> int:
    """Sublane packing for full vregs: 8 for 4-byte, 16 for 2-byte, 32 for 1-byte."""
    itemsize = jnp.dtype(dtype).itemsize
    return max(8, 32 // max(itemsize, 1))


def _pick_lanes(total: int, min_rows: int):
    """Widest multiple of 128 that divides `total` while keeping >= min_rows rows."""
    if total < 128 * min_rows:
        return None
    max_lanes = min(total // min_rows, 32768)
    lanes = (max_lanes // 128) * 128
    while lanes >= 128:
        if total % lanes == 0:
            return lanes
        lanes -= 128
    return None


def _tiled_identity_copy(x_2d, *, target_block_bytes=2 * 1024 * 1024,
                         min_programs=4):
    """HBM->HBM identity copy of a lane-dense (rows, lanes) slab."""
    rows, lanes = x_2d.shape
    itemsize = jnp.dtype(x_2d.dtype).itemsize
    pack = _sublane_pack(x_2d.dtype)

    # Bytes-based block sizing (~2 MiB per buffer), rounded to the sublane pack.
    block_rows = max(target_block_bytes // (lanes * itemsize), pack)
    block_rows = max((block_rows // pack) * pack, pack)

    # Keep >= min_programs grid steps when the slab is big enough, so the
    # "parallel" axis can be split across both v7x TensorCores.
    if rows >= min_programs * pack:
        split_rows = -(-rows // min_programs)           # ceil
        split_rows = max((split_rows // pack) * pack, pack)
        block_rows = min(block_rows, split_rows)

    if block_rows >= rows:
        block_rows = rows  # single full-extent block (always legal)

    grid = (pl.cdiv(rows, block_rows),)

    # Double-buffered footprint: 2 arrays x 2 buffers x block bytes (+ slack).
    block_bytes = block_rows * lanes * itemsize
    vmem_limit = min(max(4 * block_bytes + (4 << 20), 16 << 20), 48 << 20)

    return pl.pallas_call(
        _copy_kernel,
        out_shape=jax.ShapeDtypeStruct((rows, lanes), x_2d.dtype),
        grid=grid,
        in_specs=[pl.BlockSpec((block_rows, lanes), lambda i: (i, 0))],
        out_specs=pl.BlockSpec((block_rows, lanes), lambda i: (i, 0)),
        compiler_params=pltpu.CompilerParams(
            dimension_semantics=("parallel",),
            vmem_limit_bytes=vmem_limit,
        ),
    )(x_2d)


def reshape_forward(x, out_shape, *, use_pallas_copy=False):
    """Equivalent of ReShape(out_shape)(x) for a row-major contiguous input."""
    n = x.shape[0]
    feat = math.prod(x.shape[1:])
    if feat != math.prod(out_shape):
        raise ValueError(f"cannot view {x.shape} as (N, {tuple(out_shape)})")
    new_shape = (n,) + tuple(out_shape)

    if not use_pallas_copy:
        # A view of a contiguous tensor is pure metadata — zero HBM traffic.
        return jnp.reshape(x, new_shape)

    total = n * feat
    lanes = _pick_lanes(total, _sublane_pack(x.dtype))
    if lanes is None:
        # Awkward total (not a multiple of 128): no kernel needed, and a single
        # full-extent block would risk VMEM OOM — metadata reshape is exact.
        return jnp.reshape(x, new_shape)

    rows = total // lanes
    y_2d = _tiled_identity_copy(x.reshape(rows, lanes))  # metadata-only flatten
    return y_2d.reshape(new_shape)                       # metadata-only unflatten


if __name__ == "__main__":
    key = jax.random.PRNGKey(0)

    # Small shapes consistent with an NCHW image tensor feeding a decoder.
    N, C, H, W = 2, 4, 16, 16
    x = jax.random.normal(key, (N, C, H, W), dtype=jnp.float32)

    # ReShape(out_shape) with out_shape = (16, 64); 16 * 64 == C * H * W.
    out_shape = (16, 64)

    # Production path: metadata-only reshape (the real optimization).
    y = jax.block_until_ready(reshape_forward(x, out_shape))

    # Exercise the Pallas identity-copy path once as well.
    y_pallas = jax.block_until_ready(
        reshape_forward(x, out_shape, use_pallas_copy=True))

    # Correctness check against plain JAX reshape (== torch .view semantics).
    y_ref = x.reshape(N, *out_shape)
    assert y.shape == (N,) + tuple(out_shape), y.shape
    assert y_pallas.shape == (N,) + tuple(out_shape), y_pallas.shape
    assert y.dtype == x.dtype and y_pallas.dtype == x.dtype
    assert bool(jnp.array_equal(y, y_ref))
    assert bool(jnp.array_equal(y_pallas, y_ref))

    print("KERNEL_OK")
</pallas_src>

<mosaic_0001>
module attributes {stable_mosaic.version = 11 : i64} {
  func.func @_copy_kernel(%arg0: i32, %arg1: memref<8x256xf32, #tpu.memory_space<vmem>>, %arg2: memref<8x256xf32, #tpu.memory_space<vmem>>) attributes {dimension_semantics = [#tpu.dimension_semantics<parallel>], iteration_bounds = array<i64: 1>, scalar_prefetch = 0 : i64, scratch_operands = 0 : i64, tpu.core_type = #tpu.core_type<tc>, window_params = [{transform_indices = @transform_0, window_bounds = array<i64: 8, 256>}, {transform_indices = @transform_1, window_bounds = array<i64: 8, 256>}]} {
    %c0 = arith.constant 0 : index
    %c0_0 = arith.constant 0 : index
    %0 = vector.load %arg1[%c0, %c0_0] : memref<8x256xf32, #tpu.memory_space<vmem>>, vector<8x256xf32>
    %c0_1 = arith.constant 0 : index
    %c0_2 = arith.constant 0 : index
    %1 = vector.load %arg2[%c0_1, %c0_2] : memref<8x256xf32, #tpu.memory_space<vmem>>, vector<8x256xf32>
    tpu.vector_store %arg2[%c0_1, %c0_2], %0 {strides = array<i32>} : memref<8x256xf32, #tpu.memory_space<vmem>>, vector<8x256xf32>,
    return
  }
  func.func @transform_0(%arg0: i32) -> (i32, i32) {
    %c0_i32 = arith.constant 0 : i32
    %c0_i32_0 = arith.constant 0 : i32
    return %arg0, %c0_i32 : i32, i32
  }
  func.func @transform_1(%arg0: i32) -> (i32, i32) {
    %c0_i32 = arith.constant 0 : i32
    %c0_i32_0 = arith.constant 0 : i32
    return %arg0, %c0_i32 : i32, i32
  }
}

</mosaic_0001>

<llo_original>
// kernel: tpu_custom_call.1
$region0: #{tpu_custom_call.1}
  #allocation0 [shape = 'u32[]', space=smem, size = 0x4, offset = 0x4, fixed_abs, tag = 'smem constant byte address 0x4 - core index']
  #allocation1 [shape = 'u32[144,128]{1,0:T(1,128)}', space=vmem, size = 0x12000, scoped, tag = 'internal scratch']
  %s0 = inlined_call_operand.hbm [shape: f32[8,256], index: 0, kind: input, shape index: {}]
  %s1 = inlined_call_operand.hbm [shape: f32[8,256], index: 1, kind: output, shape index: {}]
  %s2 = sld [smem:[#allocation0]]
  $region18: #{tpu_custom_call.1} parent=0
    _
  %s4 = ssub.s32 1, %s2
  %s5 = scalar_select 0, %s4, %s2
  $region1: #{tpu_custom_call.1} parent=0
    #allocation2 [shape = 'u8[8192]{0}', space=vmem, size = 0x2000, scoped, tag = 'input window, operand 0, single buffered']
    #allocation3 [shape = 's32[1]{0}', space=sflag, size = 0x4, scoped, tag = 'scoped memory for tpu_custom_call.1']
    #allocation4 [shape = 's32[1]{0}', space=sflag, size = 0x4, scoped, tag = 'scoped memory for tpu_custom_call.1']
    #allocation5 [shape = 'u8[8192]{0}', space=vmem, size = 0x2000, scoped, tag = 'output window, operand 0, single buffered']
    %6 = vsyncpa [#allocation3], 0
    %7 = vsyncpa [#allocation4], 0
    // Predicated region
    $region2: #{tpu_custom_call.1} parent=1 // pred_check
      _
    $region3: #{tpu_custom_call.1} parent=1 // pred_check_branch
      %9 = sbr.rel (0) target = $region5
    $region4: #{tpu_custom_call.1} parent=1 // pred_region
      %s11 = ssub.s32 256, 256
      %12 = vsyncadd [#allocation3], %s11
      %s14 = sshll.u32 [#allocation2], 4
      %s15 = int_to_ptr.vmem [resolvable:$true] %s14
      %17 = dma.hbm_to_vmem [thread:$0]  %s0, 256, %s15, [#allocation3]
    $region5: #{tpu_custom_call.1} parent=1 // pred_fallthru
      _
    // Predicated region
    $region6: #{tpu_custom_call.1} parent=1 // pred_check
      _
    $region7: #{tpu_custom_call.1} parent=1 // pred_check_branch
      %19 = sbr.rel (0) target = $region9
    $region8: #{tpu_custom_call.1} parent=1 // pred_region
      %20 = dma.done [#allocation3], 256
    $region9: #{tpu_custom_call.1} parent=1 // pred_fallthru
      _
    %v21 = vld [vmem:[#allocation2] sm:$0xff]
    %v22 = vld [vmem:[#allocation2 + $0x8] sm:$0xff]
    %23 = vst [vmem:[#allocation5] sm:$0xff] %v21
    %24 = vst [vmem:[#allocation5 + $0x8] sm:$0xff] %v22
    // Predicated region
    $region10: #{tpu_custom_call.1} parent=1 // pred_check
      _
    $region11: #{tpu_custom_call.1} parent=1 // pred_check_branch
      %26 = sbr.rel (0) target = $region13
    $region12: #{tpu_custom_call.1} parent=1 // pred_region
      %s28 = ssub.s32 256, 256
      %29 = vsyncadd [#allocation4], %s28
      %s31 = sshll.u32 [#allocation5], 4
      %s32 = int_to_ptr.vmem [resolvable:$true] %s31
      %34 = dma.vmem_to_hbm [thread:$0]  %s32, 256, %s1, [#allocation4]
    $region13: #{tpu_custom_call.1} parent=1 // pred_fallthru
      _
    // Predicated region
    $region14: #{tpu_custom_call.1} parent=1 // pred_check
      _
    $region15: #{tpu_custom_call.1} parent=1 // pred_check_branch
      %36 = sbr.rel (0) target = $region17
    $region16: #{tpu_custom_call.1} parent=1 // pred_region
      %37 = dma.done [#allocation4], 256
    $region17: #{tpu_custom_call.1} parent=1 // pred_fallthru
      _
    %38 = vsyncpa [#allocation3], 1
    %39 = vsyncpa [#allocation4], 1

</llo_original>
